<compile_context>
chip_gen: v7x
topology: tpu7x:2x2x1
jax: 0.10.0
libtpu: 0.0.40
codegen_flags: <defaults>
</compile_context>

<pallas_src>
import jax
import jax.numpy as jnp
from jax.experimental import pallas as pl
from jax.experimental.pallas import tpu as pltpu


_LANES = 512                            # lane-dense last dim (multiple of 128)
_FAST_PATH_BYTES = 1 << 20              # below this, skip the kernel entirely
_VMEM_BUDGET_BYTES = 12 * 1024 * 1024   # total for (1 + N) x 2 double buffers


def _broadcast_kernel(x_ref, *out_refs):
    # Load the current tile once; fan it out to every stream's output tile.
    x = x_ref[...]
    for o_ref in out_refs:
        o_ref[...] = x


def broadcast(x: jax.Array, num_streams: int, *, force_kernel: bool = False):
    """Pallas equivalent of continual.Broadcast(num_streams).forward(x).

    Returns a Python list of `num_streams` arrays, each equal to `x`.
    """
    assert isinstance(num_streams, int), (
        "Unknown number of target streams in Broadcast."
    )
    if num_streams <= 0:
        return []

    nbytes = x.size * x.dtype.itemsize
    if not force_kernel and nbytes < _FAST_PATH_BYTES:
        # Zero-copy fast path: JAX arrays are immutable, so returning the same
        # array N times is bit-identical to the PyTorch module's output.
        return [x for _ in range(num_streams)]

    # ---- layout plumbing: flatten to a lane-dense (rows, _LANES) slab ----
    n = x.size
    flat = x.reshape(-1)
    n_pad = pl.cdiv(n, _LANES) * _LANES
    if n_pad != n:
        flat = jnp.pad(flat, (0, n_pad - n))
    rows = n_pad // _LANES

    # ---- pick a row-block so (1 + N) x 2 double buffers fit the VMEM budget --
    per_buf_bytes = _VMEM_BUDGET_BYTES // (2 * (1 + num_streams))
    rows_fit = per_buf_bytes // (_LANES * x.dtype.itemsize)
    row_block = int(min(1024, max(32, (rows_fit // 32) * 32)))
    if row_block >= rows:
        row_block = rows            # single full-extent block along rows
    elif rows % row_block:
        pad_rows = row_block - (rows % row_block)
        flat = jnp.pad(flat, (0, pad_rows * _LANES))
        rows += pad_rows

    x2d = flat.reshape(rows, _LANES)
    grid = (rows // row_block,)

    out_shapes = tuple(
        jax.ShapeDtypeStruct((rows, _LANES), x.dtype) for _ in range(num_streams)
    )
    out_specs = tuple(
        pl.BlockSpec((row_block, _LANES), lambda r: (r, 0))
        for _ in range(num_streams)
    )

    outs = pl.pallas_call(
        _broadcast_kernel,
        out_shape=out_shapes,
        grid=grid,
        in_specs=[pl.BlockSpec((row_block, _LANES), lambda r: (r, 0))],
        out_specs=out_specs,
        compiler_params=pltpu.CompilerParams(
            dimension_semantics=("parallel",),
            vmem_limit_bytes=32 * 1024 * 1024,
        ),
    )(x2d)

    # ---- undo the layout plumbing per stream ----
    def unflatten(o):
        o_flat = o.reshape(-1)
        if o_flat.size != n:
            o_flat = o_flat[:n]
        return o_flat.reshape(x.shape)

    return [unflatten(o) for o in outs]


if __name__ == "__main__":
    key = jax.random.PRNGKey(0)
    # Small NCHW input consistent with a continual-conv style stream.
    x = jax.random.normal(key, (2, 4, 16, 16), dtype=jnp.float32)

    num_streams = 3

    # Exercise the Pallas kernel path explicitly.
    streams = broadcast(x, num_streams, force_kernel=True)
    streams = [jax.block_until_ready(s) for s in streams]

    assert len(streams) == num_streams
    for s in streams:
        assert s.shape == x.shape and s.dtype == x.dtype
        assert bool(jnp.all(s == x))

    # Default (fast) path for tiny inputs is also semantically identical.
    fast = broadcast(x, num_streams)
    assert len(fast) == num_streams
    for s in fast:
        assert s.shape == x.shape and s.dtype == x.dtype
        assert bool(jnp.all(s == x))

    print("KERNEL_OK")
</pallas_src>

<mosaic_0001>
module attributes {stable_mosaic.version = 11 : i64} {
  func.func @_broadcast_kernel(%arg0: i32, %arg1: memref<4x512xf32, #tpu.memory_space<vmem>>, %arg2: memref<4x512xf32, #tpu.memory_space<vmem>>, %arg3: memref<4x512xf32, #tpu.memory_space<vmem>>, %arg4: memref<4x512xf32, #tpu.memory_space<vmem>>) attributes {dimension_semantics = [#tpu.dimension_semantics<parallel>], iteration_bounds = array<i64: 1>, scalar_prefetch = 0 : i64, scratch_operands = 0 : i64, tpu.core_type = #tpu.core_type<tc>, window_params = [{transform_indices = @transform_0, window_bounds = array<i64: 4, 512>}, {transform_indices = @transform_1, window_bounds = array<i64: 4, 512>}, {transform_indices = @transform_2, window_bounds = array<i64: 4, 512>}, {transform_indices = @transform_3, window_bounds = array<i64: 4, 512>}]} {
    %c0 = arith.constant 0 : index
    %c0_0 = arith.constant 0 : index
    %0 = vector.load %arg1[%c0, %c0_0] : memref<4x512xf32, #tpu.memory_space<vmem>>, vector<4x512xf32>
    %c0_1 = arith.constant 0 : index
    %c0_2 = arith.constant 0 : index
    %1 = vector.load %arg2[%c0_1, %c0_2] : memref<4x512xf32, #tpu.memory_space<vmem>>, vector<4x512xf32>
    tpu.vector_store %arg2[%c0_1, %c0_2], %0 {strides = array<i32>} : memref<4x512xf32, #tpu.memory_space<vmem>>, vector<4x512xf32>,
    %c0_3 = arith.constant 0 : index
    %c0_4 = arith.constant 0 : index
    %2 = vector.load %arg3[%c0_3, %c0_4] : memref<4x512xf32, #tpu.memory_space<vmem>>, vector<4x512xf32>
    tpu.vector_store %arg3[%c0_3, %c0_4], %0 {strides = array<i32>} : memref<4x512xf32, #tpu.memory_space<vmem>>, vector<4x512xf32>,
    %c0_5 = arith.constant 0 : index
    %c0_6 = arith.constant 0 : index
    %3 = vector.load %arg4[%c0_5, %c0_6] : memref<4x512xf32, #tpu.memory_space<vmem>>, vector<4x512xf32>
    tpu.vector_store %arg4[%c0_5, %c0_6], %0 {strides = array<i32>} : memref<4x512xf32, #tpu.memory_space<vmem>>, vector<4x512xf32>,
    return
  }
  func.func @transform_0(%arg0: i32) -> (i32, i32) {
    %c0_i32 = arith.constant 0 : i32
    %c0_i32_0 = arith.constant 0 : i32
    return %arg0, %c0_i32 : i32, i32
  }
  func.func @transform_1(%arg0: i32) -> (i32, i32) {
    %c0_i32 = arith.constant 0 : i32
    %c0_i32_0 = arith.constant 0 : i32
    return %arg0, %c0_i32 : i32, i32
  }
  func.func @transform_2(%arg0: i32) -> (i32, i32) {
    %c0_i32 = arith.constant 0 : i32
    %c0_i32_0 = arith.constant 0 : i32
    return %arg0, %c0_i32 : i32, i32
  }
  func.func @transform_3(%arg0: i32) -> (i32, i32) {
    %c0_i32 = arith.constant 0 : i32
    %c0_i32_0 = arith.constant 0 : i32
    return %arg0, %c0_i32 : i32, i32
  }
}

</mosaic_0001>

<llo_original>
// kernel: tpu_custom_call.1
$region0: #{tpu_custom_call.1}
  #allocation0 [shape = 'u32[]', space=smem, size = 0x4, offset = 0x4, fixed_abs, tag = 'smem constant byte address 0x4 - core index']
  #allocation1 [shape = 'u32[144,128]{1,0:T(1,128)}', space=vmem, size = 0x12000, scoped, tag = 'internal scratch']
  %s0 = inlined_call_operand.hbm [shape: f32[4,512], index: 0, kind: input, shape index: {}]
  %s1 = inlined_call_operand.hbm [shape: f32[4,512], index: 1, kind: output, shape index: {0}]
  %s2 = inlined_call_operand.hbm [shape: f32[4,512], index: 2, kind: output, shape index: {1}]
  %s3 = inlined_call_operand.hbm [shape: f32[4,512], index: 3, kind: output, shape index: {2}]
  %4 = xla_tuple %s1, %s2, %s3
  %s5 = sld [smem:[#allocation0]]
  $region34: #{tpu_custom_call.1} parent=0
    _
  %s7 = ssub.s32 1, %s5
  %s8 = scalar_select 0, %s7, %s5
  $region1: #{tpu_custom_call.1} parent=0
    #allocation2 [shape = 'u8[8192]{0}', space=vmem, size = 0x2000, scoped, tag = 'input window, operand 0, single buffered']
    #allocation3 [shape = 's32[1]{0}', space=sflag, size = 0x4, scoped, tag = 'scoped memory for tpu_custom_call.1']
    #allocation4 [shape = 's32[1]{0}', space=sflag, size = 0x4, scoped, tag = 'scoped memory for tpu_custom_call.1']
    #allocation5 [shape = 'u8[8192]{0}', space=vmem, size = 0x2000, scoped, tag = 'output window, operand 0, single buffered']
    #allocation6 [shape = 'u8[8192]{0}', space=vmem, size = 0x2000, scoped, tag = 'output window, operand 1, single buffered']
    #allocation7 [shape = 's32[1]{0}', space=sflag, size = 0x4, scoped, tag = 'scoped memory for tpu_custom_call.1']
    #allocation8 [shape = 'u8[8192]{0}', space=vmem, size = 0x2000, scoped, tag = 'output window, operand 2, single buffered']
    %9 = vsyncpa [#allocation3], 0
    %10 = vsyncpa [#allocation4], 0
    %11 = vsyncpa [#allocation7], 0
    // Predicated region
    $region2: #{tpu_custom_call.1} parent=1 // pred_check
      _
    $region3: #{tpu_custom_call.1} parent=1 // pred_check_branch
      %13 = sbr.rel (0) target = $region5
    $region4: #{tpu_custom_call.1} parent=1 // pred_region
      %s15 = ssub.s32 256, 256
      %16 = vsyncadd [#allocation3], %s15
      %s18 = sshll.u32 [#allocation2], 4
      %s19 = int_to_ptr.vmem [resolvable:$true] %s18
      %21 = dma.hbm_to_vmem [thread:$0]  %s0, 256, %s19, [#allocation3]
    $region5: #{tpu_custom_call.1} parent=1 // pred_fallthru
      _
    // Predicated region
    $region6: #{tpu_custom_call.1} parent=1 // pred_check
      _
    $region7: #{tpu_custom_call.1} parent=1 // pred_check_branch
      %23 = sbr.rel (0) target = $region9
    $region8: #{tpu_custom_call.1} parent=1 // pred_region
      %24 = dma.done [#allocation3], 256
    $region9: #{tpu_custom_call.1} parent=1 // pred_fallthru
      _
    %v25 = vld [vmem:[#allocation2] sm:$0xff]
    %v26 = vld [vmem:[#allocation2 + $0x8] sm:$0xff]
    %27 = vst [vmem:[#allocation5] sm:$0xff] %v25
    %28 = vst [vmem:[#allocation5 + $0x8] sm:$0xff] %v26
    %29 = vst [vmem:[#allocation6] sm:$0xff] %v25
    %30 = vst [vmem:[#allocation6 + $0x8] sm:$0xff] %v26
    %31 = vst [vmem:[#allocation8] sm:$0xff] %v25
    %32 = vst [vmem:[#allocation8 + $0x8] sm:$0xff] %v26
    // Predicated region
    $region10: #{tpu_custom_call.1} parent=1 // pred_check
      _
    $region11: #{tpu_custom_call.1} parent=1 // pred_check_branch
      %34 = sbr.rel (0) target = $region13
    $region12: #{tpu_custom_call.1} parent=1 // pred_region
      %s36 = ssub.s32 256, 256
      %37 = vsyncadd [#allocation4], %s36
      %s39 = sshll.u32 [#allocation5], 4
      %s40 = int_to_ptr.vmem [resolvable:$true] %s39
      %42 = dma.vmem_to_hbm [thread:$0]  %s40, 256, %s1, [#allocation4]
    $region13: #{tpu_custom_call.1} parent=1 // pred_fallthru
      _
    // Predicated region
    $region14: #{tpu_custom_call.1} parent=1 // pred_check
      _
    $region15: #{tpu_custom_call.1} parent=1 // pred_check_branch
      %44 = sbr.rel (0) target = $region17
    $region16: #{tpu_custom_call.1} parent=1 // pred_region
      %s46 = ssub.s32 256, 256
      %47 = vsyncadd [#allocation7], %s46
      %s49 = sshll.u32 [#allocation6], 4
      %s50 = int_to_ptr.vmem [resolvable:$true] %s49
      %52 = dma.vmem_to_hbm [thread:$0]  %s50, 256, %s2, [#allocation7]
    $region17: #{tpu_custom_call.1} parent=1 // pred_fallthru
      _
    // Predicated region
    $region18: #{tpu_custom_call.1} parent=1 // pred_check
      _
    $region19: #{tpu_custom_call.1} parent=1 // pred_check_branch
      %54 = sbr.rel (0) target = $region21
    $region20: #{tpu_custom_call.1} parent=1 // pred_region
      %s56 = ssub.s32 256, 256
      %57 = vsyncadd [#allocation7], %s56
      %s59 = sshll.u32 [#allocation8], 4
      %s60 = int_to_ptr.vmem [resolvable:$true] %s59
      %62 = dma.vmem_to_hbm [thread:$0]  %s60, 256, %s3, [#allocation7]
    $region21: #{tpu_custom_call.1} parent=1 // pred_fallthru
      _
    // Predicated region
    $region22: #{tpu_custom_call.1} parent=1 // pred_check
      _
    $region23: #{tpu_custom_call.1} parent=1 // pred_check_branch
      %64 = sbr.rel (0) target = $region25
    $region24: #{tpu_custom_call.1} parent=1 // pred_region
      %65 = dma.done [#allocation4], 256
    $region25: #{tpu_custom_call.1} parent=1 // pred_fallthru
      _
    // Predicated region
    $region26: #{tpu_custom_call.1} parent=1 // pred_check
      _
    $region27: #{tpu_custom_call.1} parent=1 // pred_check_branch
      %67 = sbr.rel (0) target = $region29
    $region28: #{tpu_custom_call.1} parent=1 // pred_region
      %68 = dma.done [#allocation7], 256
    $region29: #{tpu_custom_call.1} parent=1 // pred_fallthru
      _
    // Predicated region
    $region30: #{tpu_custom_call.1} parent=1 // pred_check
      _
    $region31: #{tpu_custom_call.1} parent=1 // pred_check_branch
      %70 = sbr.rel (0) target = $region33
    $region32: #{tpu_custom_call.1} parent=1 // pred_region
      %71 = dma.done [#allocation7], 256
    $region33: #{tpu_custom_call.1} parent=1 // pred_fallthru
      _
    %72 = vsyncpa [#allocation3], 1
    %73 = vsyncpa [#allocation4], 1
    %74 = vsyncpa [#allocation7], 1

</llo_original>
